<compile_context>
chip_gen: v7x
topology: tpu7x:2x2x1
jax: 0.10.0
libtpu: 0.0.40
codegen_flags: <defaults>
</compile_context>

<pallas_src>
import functools

import jax
import jax.numpy as jnp
from jax.experimental import pallas as pl
from jax.experimental.pallas import tpu as pltpu

# --- model hyper-parameters (synthetic vocab; module defines embedding_dim) ---
EMBEDDING_DIM = 384          # from the PyTorch module
VOCAB_SIZE = 64              # synthetic `len(vocab)` for this self-contained demo
DROPOUT_P = 0.1
MAX_TILE_TOKENS = 2048       # tokens per grid step (sweep 512-4096; 2048 default)


def _round_up(x, m):
    return (x + m - 1) // m * m


def _pick_tile_t(t_pad, max_tile):
    """Largest multiple-of-8 divisor of t_pad that is <= max_tile."""
    cand = min(max_tile, t_pad)
    cand -= cand % 8
    cand = max(cand, 8)
    while t_pad % cand != 0:
        cand -= 8
    return cand


def _hash_bits_u32(seed_u32, base_row_u32, tile_t, dim):
    """Portable counter-based PRNG (lowbias32 finalizer), pure uint32 VPU ops."""
    row = jax.lax.broadcasted_iota(jnp.int32, (tile_t, dim), 0).astype(jnp.uint32)
    colu = jax.lax.broadcasted_iota(jnp.int32, (tile_t, dim), 1).astype(jnp.uint32)
    x = (row + base_row_u32) * jnp.uint32(dim) + colu
    x = x + seed_u32 * jnp.uint32(0x9E3779B9)
    x = x ^ (x >> 16)
    x = x * jnp.uint32(0x7FEB352D)
    x = x ^ (x >> 15)
    x = x * jnp.uint32(0x846CA68B)
    x = x ^ (x >> 16)
    return x


def _token_embedding_kernel(seed_ref, ids_ref, emb_ref, out_ref, *,
                            p, training, tile_t, dim, use_hw_prng):
    # ids_ref : (tile_t, 1) int32   — token ids for this tile
    # emb_ref : (VOCAB, D) float32  — full embedding table (VMEM resident)
    # out_ref : (tile_t, D)         — output tile
    ids = ids_ref[...]                                        # (tile_t, 1)
    vocab = emb_ref.shape[0]

    # Embedding lookup as one-hot @ table (exact row selection on the MXU).
    col = jax.lax.broadcasted_iota(jnp.int32, (tile_t, vocab), 1)
    match = ids == col                                        # (tile_t, VOCAB)
    if training:
        # Fold the 1/(1-p) inverted-dropout scale into the one-hot so the MXU
        # carries it; avoids a full (tile_t, D) VPU multiply later.
        inv_keep = jnp.float32(1.0 / (1.0 - p))
        onehot = jnp.where(match, inv_keep, jnp.float32(0.0)).astype(emb_ref.dtype)
    else:
        onehot = match.astype(emb_ref.dtype)
    rows = jnp.dot(onehot, emb_ref[...],
                   preferred_element_type=jnp.float32)        # (tile_t, D)

    if training:
        # Drop iff bits < round(p * 2**32); kept values already scaled above.
        threshold = jnp.uint32(int(round(p * (2.0 ** 32))))
        if use_hw_prng:
            # Per-program seeding -> stream independent of megacore sharding.
            pltpu.prng_seed(seed_ref[0], pl.program_id(0))
            raw = pltpu.prng_random_bits((tile_t, dim))
            bits = raw if raw.dtype == jnp.uint32 else pltpu.bitcast(raw, jnp.uint32)
        else:
            seed_u32 = seed_ref[0].astype(jnp.uint32)
            base = (pl.program_id(0) * tile_t).astype(jnp.uint32)
            bits = _hash_bits_u32(seed_u32, base, tile_t, dim)
        rows = jnp.where(bits >= threshold, rows, jnp.float32(0.0))

    out_ref[...] = rows.astype(out_ref.dtype)


def token_embedding(x_ids, emb_table, seed, *, p=DROPOUT_P, training=True,
                    max_tile_tokens=MAX_TILE_TOKENS, out_dtype=jnp.float32):
    """x_ids: (B, S) int32 token ids. Returns (B, S, D) in `out_dtype`.

    `out_dtype=jnp.bfloat16` halves HBM writeback on this write-bound kernel
    if the downstream consumer runs in bf16; default f32 matches the module.
    """
    B, S = x_ids.shape
    vocab, D = emb_table.shape
    T = B * S

    # Pad tokens to a multiple of 8 (sublane) and pick tile_t as a divisor of
    # the padded length so the trailing slice is a no-op for divisible shapes.
    T_pad = _round_up(T, 8)
    tile_t = _pick_tile_t(T_pad, max_tile_tokens)

    ids_flat = x_ids.reshape(T).astype(jnp.int32)
    if T_pad != T:
        ids_flat = jnp.pad(ids_flat, (0, T_pad - T))   # <=7 padded rows
    ids_flat = ids_flat.reshape(T_pad, 1)
    seed_arr = jnp.asarray([seed], dtype=jnp.int32)

    # Hardware PRNG only lowers on real TPU; keep the hash fallback elsewhere.
    use_hw_prng = jax.default_backend() == "tpu"

    kernel = functools.partial(_token_embedding_kernel, p=p, training=training,
                               tile_t=tile_t, dim=D, use_hw_prng=use_hw_prng)

    out_bytes = jnp.dtype(out_dtype).itemsize
    # VMEM budget: double-buffered output + resident table + f32 temps + one-hot.
    vmem_limit = (2 * tile_t * D * out_bytes
                  + vocab * D * emb_table.dtype.itemsize
                  + 4 * tile_t * D * 4
                  + tile_t * vocab * 4
                  + (2 << 20))
    vmem_limit = max(32 * 1024 * 1024, vmem_limit)
    vmem_limit = min(vmem_limit, 64 * 1024 * 1024)

    cost = pl.CostEstimate(
        flops=2 * T_pad * vocab * D,
        transcendentals=0,
        bytes_accessed=T_pad * 4 + vocab * D * emb_table.dtype.itemsize
                       + T_pad * D * out_bytes,
    )

    # TODO(synk): for realistic vocab sizes (32-50K) the table no longer fits
    # VMEM; replace the full-table one-hot matmul with an id-driven row gather
    # (scalar-prefetched ids + pl.Element(1) table blocks, or a manual DMA
    # gather with memory_space=pl.ANY), optionally with a bf16 table.
    out_flat = pl.pallas_call(
        kernel,
        out_shape=jax.ShapeDtypeStruct((T_pad, D), out_dtype),
        grid_spec=pltpu.PrefetchScalarGridSpec(
            num_scalar_prefetch=1,                              # seed -> SMEM
            grid=(T_pad // tile_t,),
            in_specs=[
                pl.BlockSpec((tile_t, 1), lambda i, seed: (i, 0)),   # token ids
                # Constant index_map: table fetched once, stays VMEM resident.
                pl.BlockSpec((vocab, D), lambda i, seed: (0, 0)),
            ],
            out_specs=pl.BlockSpec((tile_t, D), lambda i, seed: (i, 0)),
        ),
        compiler_params=pltpu.CompilerParams(
            # Grid steps write disjoint output tiles and the RNG is seeded per
            # program_id, so the axis shards safely across TensorCores (v7x).
            dimension_semantics=("parallel",),
            vmem_limit_bytes=int(vmem_limit),
        ),
        cost_estimate=cost,
    )(seed_arr, ids_flat, emb_table)

    return out_flat[:T].reshape(B, S, D)


if __name__ == "__main__":
    key = jax.random.PRNGKey(0)
    k_emb, k_ids = jax.random.split(key)

    # nn.Embedding default init: N(0, 1)
    emb_table = jax.random.normal(k_emb, (VOCAB_SIZE, EMBEDDING_DIM), dtype=jnp.float32)

    B, S = 2, 8
    x = jax.random.randint(k_ids, (B, S), 0, VOCAB_SIZE, dtype=jnp.int32)

    # Eval mode (dropout = identity): check against pure-JAX embedding lookup.
    out_eval = token_embedding(x, emb_table, seed=0, training=False)
    out_eval = jax.block_until_ready(out_eval)
    ref = jnp.take(emb_table, x.reshape(-1), axis=0).reshape(B, S, EMBEDDING_DIM)
    assert out_eval.shape == (B, S, EMBEDDING_DIM)
    assert jnp.allclose(out_eval, ref, atol=1e-5, rtol=1e-5)

    # Training mode: every element must be 0 (dropped) or ~ref/(1-p) (kept).
    out_train = token_embedding(x, emb_table, seed=1234, training=True)
    out_train = jax.block_until_ready(out_train)
    assert out_train.shape == (B, S, EMBEDDING_DIM)
    assert bool(jnp.all(jnp.isfinite(out_train)))
    scaled = ref / (1.0 - DROPOUT_P)
    ok = jnp.isclose(out_train, scaled, rtol=1e-4, atol=1e-5) | (out_train == 0.0)
    assert bool(jnp.all(ok))
    frac_zero = float(jnp.mean((out_train == 0.0).astype(jnp.float32)))
    assert 0.0 < frac_zero < 0.5   # dropout actually drops ~p of elements

    print("KERNEL_OK")
</pallas_src>

<mosaic_0001>
module attributes {stable_mosaic.version = 11 : i64} {
  func.func @_token_embedding_kernel(%arg0: i32, %arg1: memref<1xi32, #tpu.memory_space<smem>>, %arg2: memref<16x1xi32, #tpu.memory_space<vmem>>, %arg3: memref<64x384xf32, #tpu.memory_space<vmem>>, %arg4: memref<16x384xf32, #tpu.memory_space<vmem>>) attributes {dimension_semantics = [#tpu.dimension_semantics<parallel>], iteration_bounds = array<i64: 1>, scalar_prefetch = 1 : i64, scratch_operands = 0 : i64, tpu.core_type = #tpu.core_type<tc>, window_params = [{transform_indices = @transform_0, window_bounds = array<i64: 16, 1>}, {pipeline_mode = #tpu.pipeline_mode<synchronous>, transform_indices = @transform_1, window_bounds = array<i64: 64, 384>}, {transform_indices = @transform_2, window_bounds = array<i64: 16, 384>}]} {
    %c0 = arith.constant 0 : index
    %c0_0 = arith.constant 0 : index
    %0 = vector.load %arg2[%c0, %c0_0] : memref<16x1xi32, #tpu.memory_space<vmem>>, vector<16x1xi32>
    %1 = tpu.iota {dimensions = array<i32: 1>} : vector<16x64xi32>
    %2 = vector.broadcast %0 : vector<16x1xi32> to vector<16x64xi32>
    %3 = arith.cmpi eq, %2, %1 : vector<16x64xi32>
    %4 = arith.extui %3 : vector<16x64xi1> to vector<16x64xi32>
    %5 = arith.sitofp %4 : vector<16x64xi32> to vector<16x64xf32>
    %c0_1 = arith.constant 0 : index
    %c0_2 = arith.constant 0 : index
    %6 = vector.load %arg3[%c0_1, %c0_2] : memref<64x384xf32, #tpu.memory_space<vmem>>, vector<64x384xf32>
    %cst = arith.constant dense<0.000000e+00> : vector<16x384xf32>
    %7 = tpu.matmul %5, %6, %cst {dimension_numbers = #tpu.dot_dimension_numbers<[1], [0], [0], [1], [0, 0, 1, 1], [], []>} : vector<16x64xf32>, vector<64x384xf32>, vector<16x384xf32> -> vector<16x384xf32>
    %c0_3 = arith.constant 0 : index
    %c0_4 = arith.constant 0 : index
    %8 = vector.load %arg4[%c0_3, %c0_4] : memref<16x384xf32, #tpu.memory_space<vmem>>, vector<16x384xf32>
    tpu.vector_store %arg4[%c0_3, %c0_4], %7 {strides = array<i32>} : memref<16x384xf32, #tpu.memory_space<vmem>>, vector<16x384xf32>,
    return
  }
  func.func @transform_0(%arg0: i32, %arg1: memref<1xi32, #tpu.memory_space<smem>>) -> (i32, i32) {
    %c0_i32 = arith.constant 0 : i32
    %c0_i32_0 = arith.constant 0 : i32
    return %arg0, %c0_i32 : i32, i32
  }
  func.func @transform_1(%arg0: i32, %arg1: memref<1xi32, #tpu.memory_space<smem>>) -> (i32, i32) {
    %c0_i32 = arith.constant 0 : i32
    %c0_i32_0 = arith.constant 0 : i32
    %c0_i32_1 = arith.constant 0 : i32
    return %c0_i32, %c0_i32_0 : i32, i32
  }
  func.func @transform_2(%arg0: i32, %arg1: memref<1xi32, #tpu.memory_space<smem>>) -> (i32, i32) {
    %c0_i32 = arith.constant 0 : i32
    %c0_i32_0 = arith.constant 0 : i32
    return %arg0, %c0_i32 : i32, i32
  }
}

</mosaic_0001>

<llo_original>
// kernel: tpu_custom_call.1
$region0: #{tpu_custom_call.1}
  #allocation0 [shape = 'u32[]', space=smem, size = 0x4, offset = 0x4, fixed_abs, tag = 'smem constant byte address 0x4 - core index']
  #allocation1 [shape = 'u32[144,128]{1,0:T(1,128)}', space=vmem, size = 0x12000, scoped, tag = 'internal scratch']
  #allocation2 [shape = 's32[1]{0}', space=sflag, size = 0x4, scoped, tag = 'scoped memory for tpu_custom_call.1']
  #allocation3 [shape = 's32[1]{0:T(128)S(6)}', space=smem, size = 0x200, scoped, tag = 'prefetched SMEM operand 0']
  %s0 = inlined_call_operand.<no memory space> [shape: s32[1], index: 0, kind: input, shape index: {}]
  %s1 = inlined_call_operand.vmem [shape: s32[16,1], index: 1, kind: input, shape index: {}]
  %s2 = inlined_call_operand.hbm [shape: f32[64,384], index: 2, kind: input, shape index: {}]
  %s3 = inlined_call_operand.hbm [shape: f32[16,384], index: 3, kind: output, shape index: {}]
  %s4 = sld [smem:[#allocation0]]
  $region22: #{tpu_custom_call.1} parent=0
    _
  %s6 = ssub.s32 1, %s4
  %s7 = scalar_select 0, %s6, %s4
  %8 = sst [smem:[#allocation3]] %s0
  $region1: #{tpu_custom_call.1} parent=0
    #allocation4 [shape = 'u8[98304]{0}', space=vmem, size = 0x18000, scoped, tag = 'input window, operand 2, single buffered']
    #allocation5 [shape = 's32[1]{0}', space=sflag, size = 0x4, scoped, tag = 'scoped memory for tpu_custom_call.1']
    #allocation6 [shape = 's32[1]{0}', space=sflag, size = 0x4, scoped, tag = 'scoped memory for tpu_custom_call.1']
    #allocation7 [shape = 'u8[24576]{0}', space=vmem, size = 0x6000, scoped, tag = 'output window, operand 0, single buffered']
    %9 = vsyncpa [#allocation5], 0
    %10 = vsyncpa [#allocation6], 0
    // Predicated region
    $region2: #{tpu_custom_call.1} parent=1 // pred_check
      _
    $region3: #{tpu_custom_call.1} parent=1 // pred_check_branch
      %12 = sbr.rel (0) target = $region5
    $region4: #{tpu_custom_call.1} parent=1 // pred_region
      _
    $region5: #{tpu_custom_call.1} parent=1 // pred_fallthru
      _
    // Predicated region
    $region6: #{tpu_custom_call.1} parent=1 // pred_check
      _
    $region7: #{tpu_custom_call.1} parent=1 // pred_check_branch
      %14 = sbr.rel (0) target = $region9
    $region8: #{tpu_custom_call.1} parent=1 // pred_region
      %s16 = ssub.s32 3072, 3072
      %17 = vsyncadd [#allocation5], %s16
      %s18 = sshll.u32 [#allocation4], 4
      %s19 = int_to_ptr.vmem [resolvable:$true] %s18
      %24 = dma.hbm_to_vmem [thread:$0]  %s2, 3072, %s19, [#allocation5], 384, 384, 24
    $region9: #{tpu_custom_call.1} parent=1 // pred_fallthru
      _
    // Predicated region
    $region10: #{tpu_custom_call.1} parent=1 // pred_check
      _
    $region11: #{tpu_custom_call.1} parent=1 // pred_check_branch
      %26 = sbr.rel (0) target = $region13
    $region12: #{tpu_custom_call.1} parent=1 // pred_region
      %27 = dma.done [#allocation5], 3072
    $region13: #{tpu_custom_call.1} parent=1 // pred_fallthru
      _
    %v28 = vld [vmem:[%s1] sm:$0xff]
    %v29 = vld [vmem:[%s1 + $0x8] sm:$0xff]
    %v30 = vlaneseq
    %v31 = vand.u32 %v30, 127
    %32 = vset.pattern.permute.xlu0 0
    %33 = vperm.xlu0 %32, %v28
    %v34 = vpop.permute.xlu0 %33
    %35 = vset.pattern.permute.xlu0 0
    %36 = vperm.xlu0 %35, %v29
    %v37 = vpop.permute.xlu0 %36
    %vm38 = vcmp.eq.s32.totalorder %v34, %v31
    %vm39 = vcmp.eq.s32.totalorder %v37, %v31
    %v40 = vsel %vm38, 1, 0
    %v41 = vsel %vm39, 1, 0
    %v42 = vcvt.s32.f32 %v40
    %v43 = vcvt.s32.f32 %v41
    %v44 = vld [vmem:[#allocation4] sm:$0xff]
    %v45 = vld [vmem:[#allocation4 + $0x8] sm:$0xff]
    %v46 = vld [vmem:[#allocation4 + $0x10] sm:$0xff]
    %v47 = vld [vmem:[#allocation4 + $0x18] sm:$0xff]
    %v48 = vld [vmem:[#allocation4 + $0x20] sm:$0xff]
    %v49 = vld [vmem:[#allocation4 + $0x28] sm:$0xff]
    %v50 = vld [vmem:[#allocation4 + $0x30] sm:$0xff]
    %v51 = vld [vmem:[#allocation4 + $0x38] sm:$0xff]
    %v52 = vld [vmem:[#allocation4 + $0x40] sm:$0xff]
    %v53 = vld [vmem:[#allocation4 + $0x48] sm:$0xff]
    %v54 = vld [vmem:[#allocation4 + $0x50] sm:$0xff]
    %v55 = vld [vmem:[#allocation4 + $0x58] sm:$0xff]
    %v56 = vld [vmem:[#allocation4 + $0x60] sm:$0xff]
    %v57 = vld [vmem:[#allocation4 + $0x68] sm:$0xff]
    %v58 = vld [vmem:[#allocation4 + $0x70] sm:$0xff]
    %v59 = vld [vmem:[#allocation4 + $0x78] sm:$0xff]
    %v60 = vld [vmem:[#allocation4 + $0x80] sm:$0xff]
    %v61 = vld [vmem:[#allocation4 + $0x88] sm:$0xff]
    %v62 = vld [vmem:[#allocation4 + $0x90] sm:$0xff]
    %v63 = vld [vmem:[#allocation4 + $0x98] sm:$0xff]
    %v64 = vld [vmem:[#allocation4 + $0xa0] sm:$0xff]
    %v65 = vld [vmem:[#allocation4 + $0xa8] sm:$0xff]
    %v66 = vld [vmem:[#allocation4 + $0xb0] sm:$0xff]
    %v67 = vld [vmem:[#allocation4 + $0xb8] sm:$0xff]
    %vm68 = vcmask 523264
    %v70 = vsel %vm68, %v42, 0
    %v73 = vsel %vm68, %v43, 0
    %75 = vmatprep.subr.mxu0 %v45
    %76 = vmatpush1.msra.mxu0 %v44
    %77 = vmatprep.subr.mxu0 %v48
    %78 = vmatpush1.msra.mxu0 %v47
    %79 = vmatprep.subr.mxu0 %v51
    %80 = vmatpush1.msra.mxu0 %v50
    %81 = vmatprep.subr.mxu0 %v54
    %82 = vmatpush1.msra.mxu0 %v53
    %83 = vmatprep.subr.mxu0 %v57
    %84 = vmatpush1.msra.mxu0 %v56
    %85 = vmatprep.subr.mxu0 %v60
    %86 = vmatpush1.msra.mxu0 %v59
    %87 = vmatprep.subr.mxu0 %v63
    %88 = vmatpush1.msra.mxu0 %v62
    %89 = vmatprep.subr.mxu0 %v66
    %90 = vmatpush1.msra.mxu0 %v65
    %91 = vmatprep.subr.mxu0 0.0
    %92 = vmatpush1.msra.mxu0 0.0
    %93 = vmatprep.subr.mxu0 0.0
    %94 = vmatpush1.msra.mxu0 0.0
    %95 = vmatprep.subr.mxu0 0.0
    %96 = vmatpush1.msra.mxu0 0.0
    %97 = vmatprep.subr.mxu0 0.0
    %98 = vmatpush1.msra.mxu0 0.0
    %99 = vmatprep.subr.mxu0 0.0
    %100 = vmatpush1.msra.mxu0 0.0
    %101 = vmatprep.subr.mxu0 0.0
    %102 = vmatpush1.msra.mxu0 0.0
    %103 = vmatprep.subr.mxu0 0.0
    %104 = vmatpush1.msra.mxu0 0.0
    %105 = vmatprep.subr.mxu0 0.0
    %106 = vmatpush1.msra.mxu0 0.0
    %107 = vmatprep.subr.mxu0 0.0
    %108 = vmatpush1.msra.mxu0 0.0
    %109 = vmatprep.subr.mxu0 0.0
    %110 = vmatpush1.msra.mxu0 0.0
    %111 = vmatprep.subr.mxu0 0.0
    %112 = vmatpush1.msra.mxu0 0.0
    %113 = vmatprep.subr.mxu0 0.0
    %114 = vmatpush1.msra.mxu0 0.0
    %115 = vmatprep.subr.mxu0 0.0
    %116 = vmatpush1.msra.mxu0 0.0
    %117 = vmatprep.subr.mxu0 0.0
    %118 = vmatpush1.msra.mxu0 0.0
    %119 = vmatprep.subr.mxu0 0.0
    %120 = vmatpush1.msra.mxu0 0.0
    %121 = vmatprep.subr.mxu0 0.0
    %122 = vmatpush1.msra.mxu0 0.0
    %123 = vmatprep.subr.mxu0 0.0
    %124 = vmatpush1.msra.mxu0 0.0
    %125 = vmatprep.subr.mxu0 0.0
    %126 = vmatpush1.msra.mxu0 0.0
    %127 = vmatprep.subr.mxu0 0.0
    %128 = vmatpush1.msra.mxu0 0.0
    %129 = vmatprep.subr.mxu0 0.0
    %130 = vmatpush1.msra.mxu0 0.0
    %131 = vmatprep.subr.mxu0 0.0
    %132 = vmatpush1.msra.mxu0 0.0
    %133 = vmatprep.subr.mxu0 0.0
    %134 = vmatpush1.msra.mxu0 0.0
    %135 = vmatprep.subr.mxu0 0.0
    %136 = vmatpush1.msra.mxu0 0.0
    %137 = vmatprep.subr.mxu0 0.0
    %138 = vmatpush1.msra.mxu0 0.0
    %139 = vmatprep.mubr.f32.mxu0 0.0
    %140 = vmatmul.mubr.f32.gmra.mrb[0].mxu0 %v70
    %v141 = vpop.f32.mrb[0].mxu0
    %v142 = vadd.f32 0.0, %v141
    %v143 = vpop.f32.mrb[0].mxu0
    %v144 = vadd.f32 0.0, %v143
    %145 = vmatprep.mubr.f32.mxu0 0.0
    %146 = vmatmul.mubr.f32.gmra.mrb[0].mxu0 %v73
    %v147 = vpop.f32.mrb[0].mxu0
    %v148 = vadd.f32 0.0, %v147
    %v149 = vpop.f32.mrb[0].mxu0
    %v150 = vadd.f32 0.0, %v149
    %151 = vdwg.mxu0
    %152 = vmatprep.subr.mxu0 0.0
    %153 = vmatpush1.msra.mxu0 %v46
    %154 = vmatprep.subr.mxu0 0.0
    %155 = vmatpush1.msra.mxu0 %v49
    %156 = vmatprep.subr.mxu0 0.0
    %157 = vmatpush1.msra.mxu0 %v52
    %158 = vmatprep.subr.mxu0 0.0
    %159 = vmatpush1.msra.mxu0 %v55
    %160 = vmatprep.subr.mxu0 0.0
    %161 = vmatpush1.msra.mxu0 %v58
    %162 = vmatprep.subr.mxu0 0.0
    %163 = vmatpush1.msra.mxu0 %v61
    %164 = vmatprep.subr.mxu0 0.0
    %165 = vmatpush1.msra.mxu0 %v64
    %166 = vmatprep.subr.mxu0 0.0
    %167 = vmatpush1.msra.mxu0 %v67
    %168 = vmatprep.subr.mxu0 0.0
    %169 = vmatpush1.msra.mxu0 0.0
    %170 = vmatprep.subr.mxu0 0.0
    %171 = vmatpush1.msra.mxu0 0.0
    %172 = vmatprep.subr.mxu0 0.0
    %173 = vmatpush1.msra.mxu0 0.0
    %174 = vmatprep.subr.mxu0 0.0
    %175 = vmatpush1.msra.mxu0 0.0
    %176 = vmatprep.subr.mxu0 0.0
    %177 = vmatpush1.msra.mxu0 0.0
    %178 = vmatprep.subr.mxu0 0.0
    %179 = vmatpush1.msra.mxu0 0.0
    %180 = vmatprep.subr.mxu0 0.0
    %181 = vmatpush1.msra.mxu0 0.0
    %182 = vmatprep.subr.mxu0 0.0
    %183 = vmatpush1.msra.mxu0 0.0
    %184 = vmatprep.subr.mxu0 0.0
    %185 = vmatpush1.msra.mxu0 0.0
    %186 = vmatprep.subr.mxu0 0.0
    %187 = vmatpush1.msra.mxu0 0.0
    %188 = vmatprep.subr.mxu0 0.0
    %189 = vmatpush1.msra.mxu0 0.0
    %190 = vmatprep.subr.mxu0 0.0
    %191 = vmatpush1.msra.mxu0 0.0
    %192 = vmatprep.subr.mxu0 0.0
    %193 = vmatpush1.msra.mxu0 0.0
    %194 = vmatprep.subr.mxu0 0.0
    %195 = vmatpush1.msra.mxu0 0.0
    %196 = vmatprep.subr.mxu0 0.0
    %197 = vmatpush1.msra.mxu0 0.0
    %198 = vmatprep.subr.mxu0 0.0
    %199 = vmatpush1.msra.mxu0 0.0
    %200 = vmatprep.subr.mxu0 0.0
    %201 = vmatpush1.msra.mxu0 0.0
    %202 = vmatprep.subr.mxu0 0.0
    %203 = vmatpush1.msra.mxu0 0.0
    %204 = vmatprep.subr.mxu0 0.0
    %205 = vmatpush1.msra.mxu0 0.0
    %206 = vmatprep.subr.mxu0 0.0
    %207 = vmatpush1.msra.mxu0 0.0
    %208 = vmatprep.subr.mxu0 0.0
    %209 = vmatpush1.msra.mxu0 0.0
    %210 = vmatprep.subr.mxu0 0.0
    %211 = vmatpush1.msra.mxu0 0.0
    %212 = vmatprep.subr.mxu0 0.0
    %213 = vmatpush1.msra.mxu0 0.0
    %214 = vmatprep.subr.mxu0 0.0
    %215 = vmatpush1.msra.mxu0 0.0
    %216 = vmatprep.mubr.f32.mxu0 0.0
    %217 = vmatmul.mubr.f32.gmra.mrb[0].mxu0 %v70
    %v218 = vpop.f32.mrb[0].mxu0
    %v219 = vadd.f32 0.0, %v218
    %v220 = vpop.f32.mrb[0].mxu0
    %221 = vmatprep.mubr.f32.mxu0 0.0
    %222 = vmatmul.mubr.f32.gmra.mrb[0].mxu0 %v73
    %v223 = vpop.f32.mrb[0].mxu0
    %v224 = vadd.f32 0.0, %v223
    %v225 = vpop.f32.mrb[0].mxu0
    %226 = vdwg.mxu0
    %227 = vst [vmem:[#allocation7] sm:$0xff] %v142
    %228 = vst [vmem:[#allocation7 + $0x8] sm:$0xff] %v144
    %229 = vst [vmem:[#allocation7 + $0x10] sm:$0xff] %v219
    %230 = vst [vmem:[#allocation7 + $0x18] sm:$0xff] %v148
    %231 = vst [vmem:[#allocation7 + $0x20] sm:$0xff] %v150
    %232 = vst [vmem:[#allocation7 + $0x28] sm:$0xff] %v224
    // Predicated region
    $region14: #{tpu_custom_call.1} parent=1 // pred_check
      _
    $region15: #{tpu_custom_call.1} parent=1 // pred_check_branch
      %234 = sbr.rel (0) target = $region17
    $region16: #{tpu_custom_call.1} parent=1 // pred_region
      %s236 = ssub.s32 768, 768
      %237 = vsyncadd [#allocation6], %s236
      %s238 = sshll.u32 [#allocation7], 4
      %s239 = int_to_ptr.vmem [resolvable:$true] %s238
      %244 = dma.vmem_to_hbm [thread:$0]  %s239, 768, %s3, [#allocation6], 384, 384, 24
    $region17: #{tpu_custom_call.1} parent=1 // pred_fallthru
      _
    // Predicated region
    $region18: #{tpu_custom_call.1} parent=1 // pred_check
      _
    $region19: #{tpu_custom_call.1} parent=1 // pred_check_branch
      %246 = sbr.rel (0) target = $region21
    $region20: #{tpu_custom_call.1} parent=1 // pred_region
      %247 = dma.done [#allocation6], 768
    $region21: #{tpu_custom_call.1} parent=1 // pred_fallthru
      _
    %248 = vsyncpa [#allocation5], 1
    %249 = vsyncpa [#allocation6], 1

</llo_original>
